<compile_context>
chip_gen: v6e
topology: v6e:2x2x1
jax: 0.10.0
libtpu: 0.0.40
codegen_flags: <defaults>
</compile_context>

<pallas_src>
import functools

import jax
import jax.numpy as jnp
from jax.experimental import pallas as pl
from jax.experimental.pallas import tpu as pltpu

HIDDEN = 128
LANE = 128
SUBLANE = 8


def _round_up(n, m):
    return ((n + m - 1) // m) * m


def _pad2(a, rows, cols):
    r, c = a.shape
    if (r, c) == (rows, cols):
        return a
    return jnp.pad(a, ((0, rows - r), (0, cols - c)))


def _score_net_kernel(x_ref, w1_ref, b1_ref, w2_ref, b2_ref, o_ref):
    # x_ref:[tb, Dp]  w1_ref:[Dp, Hp]  b1_ref:[1, Hp]  w2_ref:[Hp, Dp]  b2_ref:[1, Dp]
    h = jnp.dot(x_ref[...], w1_ref[...], preferred_element_type=jnp.float32)
    h = jnp.maximum(h + b1_ref[...].astype(jnp.float32), 0.0)     # bias + ReLU in f32
    y = jnp.dot(h.astype(w2_ref.dtype), w2_ref[...],
                preferred_element_type=jnp.float32)
    o_ref[...] = (y + b2_ref[...].astype(jnp.float32)).astype(o_ref.dtype)


def _choose_block_b(batch, d_pad, h_pad, itemsize, vmem_limit_bytes):
    """Largest batch tile that fits the VMEM budget; keeps >=2 grid steps when
    the batch allows (v7x megacore)."""
    # Sub-32-bit dtypes pack along sublanes -> keep tiles 16/32-row aligned.
    sub = SUBLANE if itemsize >= 4 else (16 if itemsize == 2 else 32)
    b_al = _round_up(batch, sub)
    # Resident weights/biases; assume double-buffered by the pipeline (conservative).
    weight_bytes = 2 * (2 * d_pad * h_pad + h_pad + d_pad) * itemsize
    budget = int(vmem_limit_bytes * 0.75) - weight_bytes
    # x + out tiles (double-buffered) plus the f32 hidden activation per row.
    per_row = 4 * d_pad * itemsize + h_pad * 4
    block_b = budget // max(per_row, 1)
    block_b = max(sub, min(block_b, 512, b_al))
    block_b = max(sub, (block_b // sub) * sub)
    # Keep at least 2 grid steps when possible so both v7x TensorCores get work.
    if b_al // block_b < 2 and b_al >= 2 * sub:
        block_b = _round_up((b_al + 1) // 2, sub)
    return int(block_b)


@functools.partial(jax.jit, static_argnames=("block_b", "vmem_limit_bytes"))
def score_network_forward(x, t, w1, b1, w2, b2, *, block_b=None,
                          vmem_limit_bytes=48 * 1024 * 1024):
    """Pallas forward for ScoreNetwork: relu(x @ W1 + b1) @ W2 + b2.

    `t` is accepted but unused (the PyTorch forward ignores it).
    Weights are stored pre-transposed: W1:[D, H], W2:[H, D].
    """
    del t
    B, D = x.shape
    H = w1.shape[1]
    out_dtype = x.dtype
    itemsize = jnp.dtype(x.dtype).itemsize

    # Lane-dense padding of the feature / hidden dims (multiples of 128 lanes).
    d_pad = _round_up(max(D, LANE), LANE)
    h_pad = _round_up(max(H, LANE), LANE)

    if block_b is None:
        block_b = _choose_block_b(B, d_pad, h_pad, itemsize, vmem_limit_bytes)
    grid_b = -(-B // block_b)          # cdiv: arbitrary batch sizes supported
    b_pad = grid_b * block_b

    xp = _pad2(x, b_pad, d_pad)
    w1p = _pad2(w1, d_pad, h_pad)
    b1p = _pad2(b1.reshape(1, -1), 1, h_pad)
    w2p = _pad2(w2, h_pad, d_pad)
    b2p = _pad2(b2.reshape(1, -1), 1, d_pad)

    out = pl.pallas_call(
        _score_net_kernel,
        out_shape=jax.ShapeDtypeStruct((b_pad, d_pad), out_dtype),
        grid_spec=pltpu.PrefetchScalarGridSpec(
            num_scalar_prefetch=0,
            grid=(grid_b,),
            in_specs=[
                pl.BlockSpec((block_b, d_pad), lambda i: (i, 0)),  # x tile (streamed)
                pl.BlockSpec((d_pad, h_pad), lambda i: (0, 0)),    # W1 (resident)
                pl.BlockSpec((1, h_pad), lambda i: (0, 0)),        # b1 (resident)
                pl.BlockSpec((h_pad, d_pad), lambda i: (0, 0)),    # W2 (resident)
                pl.BlockSpec((1, d_pad), lambda i: (0, 0)),        # b2 (resident)
            ],
            out_specs=pl.BlockSpec((block_b, d_pad), lambda i: (i, 0)),
        ),
        compiler_params=pltpu.CompilerParams(
            dimension_semantics=("parallel",),
            vmem_limit_bytes=vmem_limit_bytes,
        ),
    )(xp, w1p, b1p, w2p, b2p)

    return out[:B, :D]


def init_params(key, input_dim, hidden=HIDDEN, dtype=jnp.float32):
    """Deterministic init mimicking nn.Linear's U(-1/sqrt(fan_in), 1/sqrt(fan_in))."""
    k1, k2, k3, k4 = jax.random.split(key, 4)
    bound1 = 1.0 / jnp.sqrt(input_dim)
    bound2 = 1.0 / jnp.sqrt(hidden)
    # Stored already transposed: W1:[D, H], W2:[H, D]
    w1 = jax.random.uniform(k1, (input_dim, hidden), dtype, -bound1, bound1)
    b1 = jax.random.uniform(k2, (1, hidden), dtype, -bound1, bound1)
    w2 = jax.random.uniform(k3, (hidden, input_dim), dtype, -bound2, bound2)
    b2 = jax.random.uniform(k4, (1, input_dim), dtype, -bound2, bound2)
    return w1, b1, w2, b2


if __name__ == "__main__":
    key = jax.random.PRNGKey(0)
    kx, kt, kp, kx2 = jax.random.split(key, 4)

    # --- Case 1: small demo shapes (f32), input_dim=32, batch=8 ---------------
    batch, input_dim = 8, 32
    x = jax.random.normal(kx, (batch, input_dim), jnp.float32)
    t = jax.random.uniform(kt, (batch, 1), jnp.float32)  # unused by forward
    w1, b1, w2, b2 = init_params(kp, input_dim)

    out = jax.block_until_ready(score_network_forward(x, t, w1, b1, w2, b2))
    ref = jnp.maximum(x @ w1 + b1, 0.0) @ w2 + b2
    assert out.shape == (batch, input_dim)
    assert jnp.allclose(out, ref, atol=1e-5, rtol=1e-5)

    # --- Case 2: batch not divisible by tile, feature dim not multiple of 128 --
    # (exercises cdiv batch padding, lane-dense feature padding, 2-step parallel grid)
    bb, dd = 200, 48
    x2 = jax.random.normal(kx2, (bb, dd), jnp.float32)
    t2 = jnp.zeros((bb, 1), jnp.float32)
    p2 = init_params(jax.random.fold_in(kp, 1), dd)
    out2 = jax.block_until_ready(score_network_forward(x2, t2, *p2))
    ref2 = jnp.maximum(x2 @ p2[0] + p2[1], 0.0) @ p2[2] + p2[3]
    assert out2.shape == (bb, dd)
    assert jnp.allclose(out2, ref2, atol=1e-5, rtol=1e-5)

    # --- Case 3: bf16 I/O (halved HBM traffic), f32 accumulation in-kernel -----
    xb = jax.random.normal(jax.random.fold_in(kx, 2), (64, input_dim), jnp.bfloat16)
    tb = jnp.zeros((64, 1), jnp.bfloat16)
    pb = tuple(p.astype(jnp.bfloat16)
               for p in init_params(jax.random.fold_in(kp, 2), input_dim))
    outb = jax.block_until_ready(score_network_forward(xb, tb, *pb))
    assert outb.shape == (64, input_dim) and outb.dtype == jnp.bfloat16
    assert bool(jnp.all(jnp.isfinite(outb.astype(jnp.float32))))

    print("KERNEL_OK")
</pallas_src>

<mosaic_0001>
module attributes {stable_mosaic.version = 11 : i64} {
  func.func @_score_net_kernel(%arg0: i32, %arg1: memref<8x128xf32, #tpu.memory_space<vmem>>, %arg2: memref<128x128xf32, #tpu.memory_space<vmem>>, %arg3: memref<1x128xf32, #tpu.memory_space<vmem>>, %arg4: memref<128x128xf32, #tpu.memory_space<vmem>>, %arg5: memref<1x128xf32, #tpu.memory_space<vmem>>, %arg6: memref<8x128xf32, #tpu.memory_space<vmem>>) attributes {dimension_semantics = [#tpu.dimension_semantics<parallel>], iteration_bounds = array<i64: 1>, scalar_prefetch = 0 : i64, scratch_operands = 0 : i64, tpu.core_type = #tpu.core_type<tc>, window_params = [{transform_indices = @transform_0, window_bounds = array<i64: 8, 128>}, {pipeline_mode = #tpu.pipeline_mode<synchronous>, transform_indices = @transform_1, window_bounds = array<i64: 128, 128>}, {pipeline_mode = #tpu.pipeline_mode<synchronous>, transform_indices = @transform_2, window_bounds = array<i64: 1, 128>}, {pipeline_mode = #tpu.pipeline_mode<synchronous>, transform_indices = @transform_3, window_bounds = array<i64: 128, 128>}, {pipeline_mode = #tpu.pipeline_mode<synchronous>, transform_indices = @transform_4, window_bounds = array<i64: 1, 128>}, {transform_indices = @transform_5, window_bounds = array<i64: 8, 128>}]} {
    %c0 = arith.constant 0 : index
    %c0_0 = arith.constant 0 : index
    %0 = vector.load %arg1[%c0, %c0_0] : memref<8x128xf32, #tpu.memory_space<vmem>>, vector<8x128xf32>
    %c0_1 = arith.constant 0 : index
    %c0_2 = arith.constant 0 : index
    %1 = vector.load %arg2[%c0_1, %c0_2] : memref<128x128xf32, #tpu.memory_space<vmem>>, vector<128x128xf32>
    %cst = arith.constant dense<0.000000e+00> : vector<8x128xf32>
    %2 = tpu.matmul %0, %1, %cst {dimension_numbers = #tpu.dot_dimension_numbers<[1], [0], [0], [1], [0, 0, 1, 1], [], []>} : vector<8x128xf32>, vector<128x128xf32>, vector<8x128xf32> -> vector<8x128xf32>
    %c0_3 = arith.constant 0 : index
    %c0_4 = arith.constant 0 : index
    %3 = vector.load %arg3[%c0_3, %c0_4] : memref<1x128xf32, #tpu.memory_space<vmem>>, vector<1x128xf32>
    %4 = vector.broadcast %3 : vector<1x128xf32> to vector<8x128xf32>
    %5 = arith.addf %2, %4 : vector<8x128xf32>
    %cst_5 = arith.constant 0.000000e+00 : f32
    %6 = vector.broadcast %cst_5 : f32 to vector<8x128xf32>
    %7 = arith.maximumf %5, %6 : vector<8x128xf32>
    %c0_6 = arith.constant 0 : index
    %c0_7 = arith.constant 0 : index
    %8 = vector.load %arg4[%c0_6, %c0_7] : memref<128x128xf32, #tpu.memory_space<vmem>>, vector<128x128xf32>
    %cst_8 = arith.constant dense<0.000000e+00> : vector<8x128xf32>
    %9 = tpu.matmul %7, %8, %cst_8 {dimension_numbers = #tpu.dot_dimension_numbers<[1], [0], [0], [1], [0, 0, 1, 1], [], []>} : vector<8x128xf32>, vector<128x128xf32>, vector<8x128xf32> -> vector<8x128xf32>
    %c0_9 = arith.constant 0 : index
    %c0_10 = arith.constant 0 : index
    %10 = vector.load %arg5[%c0_9, %c0_10] : memref<1x128xf32, #tpu.memory_space<vmem>>, vector<1x128xf32>
    %11 = vector.broadcast %10 : vector<1x128xf32> to vector<8x128xf32>
    %12 = arith.addf %9, %11 : vector<8x128xf32>
    %c0_11 = arith.constant 0 : index
    %c0_12 = arith.constant 0 : index
    %13 = vector.load %arg6[%c0_11, %c0_12] : memref<8x128xf32, #tpu.memory_space<vmem>>, vector<8x128xf32>
    tpu.vector_store %arg6[%c0_11, %c0_12], %12 {strides = array<i32>} : memref<8x128xf32, #tpu.memory_space<vmem>>, vector<8x128xf32>,
    return
  }
  func.func @transform_0(%arg0: i32) -> (i32, i32) {
    %c0_i32 = arith.constant 0 : i32
    %c0_i32_0 = arith.constant 0 : i32
    return %arg0, %c0_i32 : i32, i32
  }
  func.func @transform_1(%arg0: i32) -> (i32, i32) {
    %c0_i32 = arith.constant 0 : i32
    %c0_i32_0 = arith.constant 0 : i32
    %c0_i32_1 = arith.constant 0 : i32
    return %c0_i32, %c0_i32_0 : i32, i32
  }
  func.func @transform_2(%arg0: i32) -> (i32, i32) {
    %c0_i32 = arith.constant 0 : i32
    %c0_i32_0 = arith.constant 0 : i32
    %c0_i32_1 = arith.constant 0 : i32
    return %c0_i32, %c0_i32_0 : i32, i32
  }
  func.func @transform_3(%arg0: i32) -> (i32, i32) {
    %c0_i32 = arith.constant 0 : i32
    %c0_i32_0 = arith.constant 0 : i32
    %c0_i32_1 = arith.constant 0 : i32
    return %c0_i32, %c0_i32_0 : i32, i32
  }
  func.func @transform_4(%arg0: i32) -> (i32, i32) {
    %c0_i32 = arith.constant 0 : i32
    %c0_i32_0 = arith.constant 0 : i32
    %c0_i32_1 = arith.constant 0 : i32
    return %c0_i32, %c0_i32_0 : i32, i32
  }
  func.func @transform_5(%arg0: i32) -> (i32, i32) {
    %c0_i32 = arith.constant 0 : i32
    %c0_i32_0 = arith.constant 0 : i32
    return %arg0, %c0_i32 : i32, i32
  }
}

</mosaic_0001>

<llo_original>
// kernel: score_network_forward.1
$region0: #{score_network_forward.1}
  #allocation0 [shape = 'u32[]', space=smem, size = 0x4, offset = 0x4, fixed_abs, tag = 'smem constant byte address 0x4 - core index']
  #allocation1 [shape = 'u32[144,128]{1,0:T(1,128)}', space=vmem, size = 0x12000, scoped, tag = 'internal scratch']
  %s0 = inlined_call_operand.vmem [shape: f32[8,128], index: 0, kind: input, shape index: {}]
  %s1 = inlined_call_operand.vmem [shape: f32[128,128], index: 1, kind: input, shape index: {}]
  %s2 = inlined_call_operand.vmem [shape: f32[1,128], index: 2, kind: input, shape index: {}]
  %s3 = inlined_call_operand.vmem [shape: f32[128,128], index: 3, kind: input, shape index: {}]
  %s4 = inlined_call_operand.vmem [shape: f32[1,128], index: 4, kind: input, shape index: {}]
  %s5 = inlined_call_operand.hbm [shape: f32[8,128], index: 5, kind: output, shape index: {}]
  %s6 = sld [smem:[#allocation0]]
  $region30: #{score_network_forward.1} parent=0
    _
  %s8 = ssub.s32 1, %s6
  %s9 = scalar_select 0, %s8, %s6
  $region1: #{score_network_forward.1} parent=0
    #allocation2 [shape = 'u8[4096]{0}', space=vmem, size = 0x1000, scoped, tag = 'output window, operand 0, single buffered']
    #allocation3 [shape = 's32[1]{0}', space=sflag, size = 0x4, scoped, tag = 'scoped memory for score_network_forward.1']
    %10 = vsyncpa [#allocation3], 0
    // Predicated region
    $region2: #{score_network_forward.1} parent=1 // pred_check
      _
    $region3: #{score_network_forward.1} parent=1 // pred_check_branch
      %12 = sbr.rel (0) target = $region5
    $region4: #{score_network_forward.1} parent=1 // pred_region
      _
    $region5: #{score_network_forward.1} parent=1 // pred_fallthru
      _
    // Predicated region
    $region6: #{score_network_forward.1} parent=1 // pred_check
      _
    $region7: #{score_network_forward.1} parent=1 // pred_check_branch
      %14 = sbr.rel (0) target = $region9
    $region8: #{score_network_forward.1} parent=1 // pred_region
      _
    $region9: #{score_network_forward.1} parent=1 // pred_fallthru
      _
    // Predicated region
    $region10: #{score_network_forward.1} parent=1 // pred_check
      _
    $region11: #{score_network_forward.1} parent=1 // pred_check_branch
      %16 = sbr.rel (0) target = $region13
    $region12: #{score_network_forward.1} parent=1 // pred_region
      _
    $region13: #{score_network_forward.1} parent=1 // pred_fallthru
      _
    // Predicated region
    $region14: #{score_network_forward.1} parent=1 // pred_check
      _
    $region15: #{score_network_forward.1} parent=1 // pred_check_branch
      %18 = sbr.rel (0) target = $region17
    $region16: #{score_network_forward.1} parent=1 // pred_region
      _
    $region17: #{score_network_forward.1} parent=1 // pred_fallthru
      _
    // Predicated region
    $region18: #{score_network_forward.1} parent=1 // pred_check
      _
    $region19: #{score_network_forward.1} parent=1 // pred_check_branch
      %20 = sbr.rel (0) target = $region21
    $region20: #{score_network_forward.1} parent=1 // pred_region
      _
    $region21: #{score_network_forward.1} parent=1 // pred_fallthru
      _
    %v21 = vld [vmem:[%s0] sm:$0xff]
    %v22 = vld [vmem:[%s1] sm:$0xff]
    %v23 = vld [vmem:[%s1 + $0x8] sm:$0xff]
    %v24 = vld [vmem:[%s1 + $0x10] sm:$0xff]
    %v25 = vld [vmem:[%s1 + $0x18] sm:$0xff]
    %v26 = vld [vmem:[%s1 + $0x20] sm:$0xff]
    %v27 = vld [vmem:[%s1 + $0x28] sm:$0xff]
    %v28 = vld [vmem:[%s1 + $0x30] sm:$0xff]
    %v29 = vld [vmem:[%s1 + $0x38] sm:$0xff]
    %v30 = vld [vmem:[%s1 + $0x40] sm:$0xff]
    %v31 = vld [vmem:[%s1 + $0x48] sm:$0xff]
    %v32 = vld [vmem:[%s1 + $0x50] sm:$0xff]
    %v33 = vld [vmem:[%s1 + $0x58] sm:$0xff]
    %v34 = vld [vmem:[%s1 + $0x60] sm:$0xff]
    %v35 = vld [vmem:[%s1 + $0x68] sm:$0xff]
    %v36 = vld [vmem:[%s1 + $0x70] sm:$0xff]
    %v37 = vld [vmem:[%s1 + $0x78] sm:$0xff]
    %v38 = vld [vmem:[%s2] sm:$0x1]
    %v40 = vlaneseq
    %v41 = vshrl.u32 %v40, 7
    %v42 = vsub.s32 0, %v41
    %v43 = vrot.slane %v38, %v42
    %45 = vmatprep.subr.mxu0 0.0
    %46 = vmatpush1.msra.mxu0 %v37
    %47 = vmatprep.subr.mxu0 0.0
    %48 = vmatpush1.msra.mxu0 %v36
    %49 = vmatprep.subr.mxu0 0.0
    %50 = vmatpush1.msra.mxu0 %v35
    %51 = vmatprep.subr.mxu0 0.0
    %52 = vmatpush1.msra.mxu0 %v34
    %53 = vmatprep.subr.mxu0 0.0
    %54 = vmatpush1.msra.mxu0 %v33
    %55 = vmatprep.subr.mxu0 0.0
    %56 = vmatpush1.msra.mxu0 %v32
    %57 = vmatprep.subr.mxu0 0.0
    %58 = vmatpush1.msra.mxu0 %v31
    %59 = vmatprep.subr.mxu0 0.0
    %60 = vmatpush1.msra.mxu0 %v30
    %61 = vmatprep.subr.mxu0 0.0
    %62 = vmatpush1.msra.mxu0 %v29
    %63 = vmatprep.subr.mxu0 0.0
    %64 = vmatpush1.msra.mxu0 %v28
    %65 = vmatprep.subr.mxu0 0.0
    %66 = vmatpush1.msra.mxu0 %v27
    %67 = vmatprep.subr.mxu0 0.0
    %68 = vmatpush1.msra.mxu0 %v26
    %69 = vmatprep.subr.mxu0 0.0
    %70 = vmatpush1.msra.mxu0 %v25
    %71 = vmatprep.subr.mxu0 0.0
    %72 = vmatpush1.msra.mxu0 %v24
    %73 = vmatprep.subr.mxu0 0.0
    %74 = vmatpush1.msra.mxu0 %v23
    %75 = vmatprep.subr.mxu0 0.0
    %76 = vmatpush1.msra.mxu0 %v22
    %77 = vmatprep.subr.mxu0 0.0
    %78 = vmatpush2.msra.mxu0 0.0
    %79 = vmatprep.subr.mxu0 0.0
    %80 = vmatpush2.msra.mxu0 0.0
    %81 = vmatprep.subr.mxu0 0.0
    %82 = vmatpush2.msra.mxu0 0.0
    %83 = vmatprep.subr.mxu0 0.0
    %84 = vmatpush2.msra.mxu0 0.0
    %85 = vmatprep.subr.mxu0 0.0
    %86 = vmatpush2.msra.mxu0 0.0
    %87 = vmatprep.subr.mxu0 0.0
    %88 = vmatpush2.msra.mxu0 0.0
    %89 = vmatprep.subr.mxu0 0.0
    %90 = vmatpush2.msra.mxu0 0.0
    %91 = vmatprep.subr.mxu0 0.0
    %92 = vmatpush2.msra.mxu0 0.0
    %93 = vmatprep.subr.mxu0 0.0
    %94 = vmatpush2.msra.mxu0 0.0
    %95 = vmatprep.subr.mxu0 0.0
    %96 = vmatpush2.msra.mxu0 0.0
    %97 = vmatprep.subr.mxu0 0.0
    %98 = vmatpush2.msra.mxu0 0.0
    %99 = vmatprep.subr.mxu0 0.0
    %100 = vmatpush2.msra.mxu0 0.0
    %101 = vmatprep.subr.mxu0 0.0
    %102 = vmatpush2.msra.mxu0 0.0
    %103 = vmatprep.subr.mxu0 0.0
    %104 = vmatpush2.msra.mxu0 0.0
    %105 = vmatprep.subr.mxu0 0.0
    %106 = vmatpush2.msra.mxu0 0.0
    %107 = vmatprep.subr.mxu0 0.0
    %108 = vmatpush2.msra.mxu0 0.0
    %109 = vmatprep.mubr.f32.mxu0 0.0
    %110 = vmatmul.mubr.f32.gmra.mxu0 %v21
    %v111 = vpop.f32.mrf.mxu0
    %v112 = vadd.f32 %v43, %v111
    %v113 = vpop.f32.mrf.mxu0
    %114 = vdwg.mxu0
    %v115 = vmax.f32 %v112, 0.0
    %v116 = vld [vmem:[%s3] sm:$0xff]
    %v117 = vld [vmem:[%s3 + $0x8] sm:$0xff]
    %v118 = vld [vmem:[%s3 + $0x10] sm:$0xff]
    %v119 = vld [vmem:[%s3 + $0x18] sm:$0xff]
    %v120 = vld [vmem:[%s3 + $0x20] sm:$0xff]
    %v121 = vld [vmem:[%s3 + $0x28] sm:$0xff]
    %v122 = vld [vmem:[%s3 + $0x30] sm:$0xff]
    %v123 = vld [vmem:[%s3 + $0x38] sm:$0xff]
    %v124 = vld [vmem:[%s3 + $0x40] sm:$0xff]
    %v125 = vld [vmem:[%s3 + $0x48] sm:$0xff]
    %v126 = vld [vmem:[%s3 + $0x50] sm:$0xff]
    %v127 = vld [vmem:[%s3 + $0x58] sm:$0xff]
    %v128 = vld [vmem:[%s3 + $0x60] sm:$0xff]
    %v129 = vld [vmem:[%s3 + $0x68] sm:$0xff]
    %v130 = vld [vmem:[%s3 + $0x70] sm:$0xff]
    %v131 = vld [vmem:[%s3 + $0x78] sm:$0xff]
    %v132 = vld [vmem:[%s4] sm:$0x1]
    %v134 = vlaneseq
    %v135 = vshrl.u32 %v134, 7
    %v136 = vsub.s32 0, %v135
    %v137 = vrot.slane %v132, %v136
    %139 = vmatprep.subr.mxu0 0.0
    %140 = vmatpush1.msra.mxu0 %v131
    %141 = vmatprep.subr.mxu0 0.0
    %142 = vmatpush1.msra.mxu0 %v130
    %143 = vmatprep.subr.mxu0 0.0
    %144 = vmatpush1.msra.mxu0 %v129
    %145 = vmatprep.subr.mxu0 0.0
    %146 = vmatpush1.msra.mxu0 %v128
    %147 = vmatprep.subr.mxu0 0.0
    %148 = vmatpush1.msra.mxu0 %v127
    %149 = vmatprep.subr.mxu0 0.0
    %150 = vmatpush1.msra.mxu0 %v126
    %151 = vmatprep.subr.mxu0 0.0
    %152 = vmatpush1.msra.mxu0 %v125
    %153 = vmatprep.subr.mxu0 0.0
    %154 = vmatpush1.msra.mxu0 %v124
    %155 = vmatprep.subr.mxu0 0.0
    %156 = vmatpush1.msra.mxu0 %v123
    %157 = vmatprep.subr.mxu0 0.0
    %158 = vmatpush1.msra.mxu0 %v122
    %159 = vmatprep.subr.mxu0 0.0
    %160 = vmatpush1.msra.mxu0 %v121
    %161 = vmatprep.subr.mxu0 0.0
    %162 = vmatpush1.msra.mxu0 %v120
    %163 = vmatprep.subr.mxu0 0.0
    %164 = vmatpush1.msra.mxu0 %v119
    %165 = vmatprep.subr.mxu0 0.0
    %166 = vmatpush1.msra.mxu0 %v118
    %167 = vmatprep.subr.mxu0 0.0
    %168 = vmatpush1.msra.mxu0 %v117
    %169 = vmatprep.subr.mxu0 0.0
    %170 = vmatpush1.msra.mxu0 %v116
    %171 = vmatprep.subr.mxu0 0.0
    %172 = vmatpush2.msra.mxu0 0.0
    %173 = vmatprep.subr.mxu0 0.0
    %174 = vmatpush2.msra.mxu0 0.0
    %175 = vmatprep.subr.mxu0 0.0
    %176 = vmatpush2.msra.mxu0 0.0
    %177 = vmatprep.subr.mxu0 0.0
    %178 = vmatpush2.msra.mxu0 0.0
    %179 = vmatprep.subr.mxu0 0.0
    %180 = vmatpush2.msra.mxu0 0.0
    %181 = vmatprep.subr.mxu0 0.0
    %182 = vmatpush2.msra.mxu0 0.0
    %183 = vmatprep.subr.mxu0 0.0
    %184 = vmatpush2.msra.mxu0 0.0
    %185 = vmatprep.subr.mxu0 0.0
    %186 = vmatpush2.msra.mxu0 0.0
    %187 = vmatprep.subr.mxu0 0.0
    %188 = vmatpush2.msra.mxu0 0.0
    %189 = vmatprep.subr.mxu0 0.0
    %190 = vmatpush2.msra.mxu0 0.0
    %191 = vmatprep.subr.mxu0 0.0
    %192 = vmatpush2.msra.mxu0 0.0
    %193 = vmatprep.subr.mxu0 0.0
    %194 = vmatpush2.msra.mxu0 0.0
    %195 = vmatprep.subr.mxu0 0.0
    %196 = vmatpush2.msra.mxu0 0.0
    %197 = vmatprep.subr.mxu0 0.0
    %198 = vmatpush2.msra.mxu0 0.0
    %199 = vmatprep.subr.mxu0 0.0
    %200 = vmatpush2.msra.mxu0 0.0
    %201 = vmatprep.subr.mxu0 0.0
    %202 = vmatpush2.msra.mxu0 0.0
    %203 = vmatprep.mubr.f32.mxu0 0.0
    %204 = vmatmul.mubr.f32.gmra.mxu0 %v115
    %v205 = vpop.f32.mrf.mxu0
    %v206 = vadd.f32 %v137, %v205
    %v207 = vpop.f32.mrf.mxu0
    %208 = vdwg.mxu0
    %209 = vst [vmem:[#allocation2] sm:$0xff] %v206
    // Predicated region
    $region22: #{score_network_forward.1} parent=1 // pred_check
      _
    $region23: #{score_network_forward.1} parent=1 // pred_check_branch
      %211 = sbr.rel (0) target = $region25
    $region24: #{score_network_forward.1} parent=1 // pred_region
      %s213 = ssub.s32 128, 128
      %214 = vsyncadd [#allocation3], %s213
      %s216 = sshll.u32 [#allocation2], 4
      %s217 = int_to_ptr.vmem [resolvable:$true] %s216
      %219 = dma.vmem_to_hbm [thread:$0]  %s217, 128, %s5, [#allocation3]
    $region25: #{score_network_forward.1} parent=1 // pred_fallthru
      _
    // Predicated region
    $region26: #{score_network_forward.1} parent=1 // pred_check
      _
    $region27: #{score_network_forward.1} parent=1 // pred_check_branch
      %221 = sbr.rel (0) target = $region29
    $region28: #{score_network_forward.1} parent=1 // pred_region
      %222 = dma.done [#allocation3], 128
    $region29: #{score_network_forward.1} parent=1 // pred_fallthru
      _
    %223 = vsyncpa [#allocation3], 1

</llo_original>
